<compile_context>
chip_gen: v7x
topology: tpu7x:2x2x1
jax: 0.10.0
libtpu: 0.0.40
codegen_flags: <defaults>
</compile_context>

<pallas_src>
import functools

import jax
import jax.numpy as jnp
from jax.experimental import pallas as pl
from jax.experimental.pallas import tpu as pltpu


# ----------------------------------------------------------------------------
# Pallas kernel: Dropout -> Linear -> LeakyReLU -> Linear -> argmax + CE + loss mix
# ----------------------------------------------------------------------------
def _hgd_head_kernel(lossn_ref, ep_ref, ng_ref, keep_ref, lab_ref,
                     w1t_ref, w1p_ref, b1_ref, w2_ref, b2_ref,
                     out_ref, *, lamd, apply_dropout, negative_slope=0.01):
    ep = ep_ref[...]                                 # [B, St] f32
    ng = ng_ref[...]                                 # [B, Sp] f32
    st = ep.shape[1]

    if apply_dropout:
        # keep mask already carries the 1/(1-p) inverted-dropout scale -> one mul each.
        ep = ep * keep_ref[:, :st]
        ng = ng * keep_ref[:, st:]

    # classifier: Linear(St+Sp -> H) with w1 pre-split -> two MXU dots, then LeakyReLU
    h = (jnp.dot(ep, w1t_ref[...], preferred_element_type=jnp.float32)
         + jnp.dot(ng, w1p_ref[...], preferred_element_type=jnp.float32)
         + b1_ref[...])
    h = jnp.where(h > 0.0, h, negative_slope * h)

    # Linear(H -> 2); w2/b2 zero-padded to 128 lanes -> logits_pad[:, 2:] == 0
    logits_pad = jnp.dot(h, w2_ref[...], preferred_element_type=jnp.float32) + b2_ref[...]

    l0 = logits_pad[:, 0:1]
    l1 = logits_pad[:, 1:2]
    pred = (l1 > l0).astype(jnp.float32)             # argmax over 2 classes, tie -> 0

    # CrossEntropyLoss (mean reduction) over 2 classes, numerically stable
    m = jnp.maximum(l0, l1)
    lse = m + jnp.log(jnp.exp(l0 - m) + jnp.exp(l1 - m))   # [B, 1]
    lab = lab_ref[:, 0:1]                                   # [B, 1] (0.0 / 1.0)
    picked = lab * l1 + (1.0 - lab) * l0
    nll = lse - picked                                      # [B, 1]
    loss_c = jnp.sum(nll) * (1.0 / nll.shape[0])
    loss = loss_c + (1.0 - lamd) * lossn_ref[0]

    # single lane-dense output slab: cols 0-1 logits, 2 pred, 3 loss_c, 4 loss
    lane = jax.lax.broadcasted_iota(jnp.int32, logits_pad.shape, 1)
    slab = jnp.where(lane == 2, pred, logits_pad)
    slab = jnp.where(lane == 3, loss_c, slab)
    slab = jnp.where(lane == 4, loss, slab)
    out_ref[...] = slab


# ----------------------------------------------------------------------------
# Wrapper reproducing the HGDModel.forward tail (post-encoder part)
# ----------------------------------------------------------------------------
def hgd_classifier_forward(ep_text_rep, neigh_rep, batch_labels, loss_n, params,
                           *, lamd, dropout_p, training=True, rng_key=None):
    ep = ep_text_rep.astype(jnp.float32)
    ng = neigh_rep.astype(jnp.float32)
    B, st = ep.shape
    sp = ng.shape[1]

    apply_dropout = bool(training) and float(dropout_p) > 0.0
    if apply_dropout:
        if rng_key is None:
            rng_key = jax.random.PRNGKey(0)
        keep_prob = 1.0 - float(dropout_p)
        # inverted dropout with the scale folded into the mask
        keep = jnp.where(jax.random.bernoulli(rng_key, keep_prob, (B, st + sp)),
                         jnp.float32(1.0 / keep_prob), jnp.float32(0.0))
    else:
        keep = jnp.ones((B, st + sp), jnp.float32)

    # labels as a lane-dense f32 tile (avoids a masked 1-lane int32 DMA)
    lab_lane = jnp.broadcast_to(batch_labels.astype(jnp.float32)[:, None], (B, 128))
    loss_n_arr = jnp.asarray(loss_n, jnp.float32).reshape((1,))

    kernel = functools.partial(_hgd_head_kernel,
                               lamd=float(lamd),
                               apply_dropout=apply_dropout)

    slab = pl.pallas_call(
        kernel,
        out_shape=jax.ShapeDtypeStruct((B, 128), jnp.float32),
        in_specs=[
            pl.BlockSpec(memory_space=pltpu.SMEM),   # loss_n scalar
            pl.BlockSpec(memory_space=pltpu.VMEM),   # ep_text_rep
            pl.BlockSpec(memory_space=pltpu.VMEM),   # neigh_rep
            pl.BlockSpec(memory_space=pltpu.VMEM),   # dropout keep mask
            pl.BlockSpec(memory_space=pltpu.VMEM),   # labels (lane-dense f32)
            pl.BlockSpec(memory_space=pltpu.VMEM),   # w1_text
            pl.BlockSpec(memory_space=pltpu.VMEM),   # w1_path
            pl.BlockSpec(memory_space=pltpu.VMEM),   # b1
            pl.BlockSpec(memory_space=pltpu.VMEM),   # w2 (padded to 128 lanes)
            pl.BlockSpec(memory_space=pltpu.VMEM),   # b2 (padded to 128 lanes)
        ],
        out_specs=pl.BlockSpec(memory_space=pltpu.VMEM),
    )(loss_n_arr, ep, ng, keep, lab_lane,
      params["w1_text"], params["w1_path"], params["b1"],
      params["w2_pad"], params["b2_pad"])

    logits = slab[:, :2]
    predicted_label = slab[:, 2].astype(jnp.int32)
    if training:
        loss_c = slab[0, 3]
        loss = slab[0, 4]
        return loss, loss_c, loss_n, loss_n, logits, predicted_label
    return logits, predicted_label


# ----------------------------------------------------------------------------
# Pure-JAX reference (for correctness check against the kernel)
# ----------------------------------------------------------------------------
def _reference_forward(ep, ng, labels, loss_n, params, *, lamd, dropout_p,
                       training, rng_key):
    x = jnp.concatenate([ep, ng], axis=-1).astype(jnp.float32)
    if training and dropout_p > 0.0:
        keep_prob = 1.0 - dropout_p
        keep = jnp.where(jax.random.bernoulli(rng_key, keep_prob, x.shape),
                         jnp.float32(1.0 / keep_prob), jnp.float32(0.0))
        x = x * keep
    w1 = jnp.concatenate([params["w1_text"], params["w1_path"]], axis=0)
    h = x @ w1 + params["b1"]
    h = jnp.where(h > 0.0, h, 0.01 * h)
    logits = h @ params["w2_pad"][:, :2] + params["b2_pad"][:, :2]
    pred = jnp.argmax(logits, axis=1).astype(jnp.int32)
    lse = jax.nn.logsumexp(logits, axis=1)
    picked = jnp.take_along_axis(logits, labels[:, None].astype(jnp.int32), axis=1)[:, 0]
    loss_c = jnp.mean(lse - picked)
    loss = loss_c + (1.0 - lamd) * loss_n
    return loss, loss_c, logits, pred


# ----------------------------------------------------------------------------
# Deterministic parameter / input construction (synthetic, no checkpoints)
# ----------------------------------------------------------------------------
def build_params_and_inputs():
    config = dict(text_out_dim=128, neigh_output_dim=128, path_output_dim=128,
                  dropout=0.1, lamd=0.7)
    B = 8
    st = config["text_out_dim"]
    sp = config["path_output_dim"]
    H = st                      # Linear(st + sp, st)
    d_in = st + sp

    key = jax.random.PRNGKey(0)
    keys = jax.random.split(key, 12)

    # "pretrained" embedding tables from __init__ (consumed only by the stubbed encoders)
    concept_emb = jax.random.normal(keys[0], (50, 32), jnp.float32) * 0.02
    relation_emb = jax.random.normal(keys[1], (17, 32), jnp.float32) * 0.02
    del concept_emb, relation_emb

    w1 = jax.random.normal(keys[2], (d_in, H), jnp.float32) * (1.0 / jnp.sqrt(d_in))
    b1 = jax.random.normal(keys[3], (1, H), jnp.float32) * 0.01
    w2 = jax.random.normal(keys[4], (H, 2), jnp.float32) * (1.0 / jnp.sqrt(H))
    b2 = jax.random.normal(keys[5], (1, 2), jnp.float32) * 0.01

    # one-time parameter prep (split / pad at build time, not per forward call)
    params = {
        "w1_text": w1[:st],                                              # [st, H]
        "w1_path": w1[st:],                                              # [sp, H]
        "b1": b1,                                                        # [1, H]
        "w2_pad": jnp.zeros((H, 128), jnp.float32).at[:, :2].set(w2),    # [H, 128]
        "b2_pad": jnp.zeros((1, 128), jnp.float32).at[:, :2].set(b2),    # [1, 128]
    }

    # stubbed encoder outputs (see TODO at top)
    ep_text_rep = jax.random.normal(keys[6], (B, st), jnp.float32)
    neigh_rep = jax.random.normal(keys[7], (B, sp), jnp.float32)
    loss_n = jnp.abs(jax.random.normal(keys[8], (), jnp.float32))
    batch_labels = jax.random.randint(keys[9], (B,), 0, 2, jnp.int32)
    dropout_key = keys[10]

    return config, params, ep_text_rep, neigh_rep, batch_labels, loss_n, dropout_key


if __name__ == "__main__":
    (config, params, ep_text_rep, neigh_rep,
     batch_labels, loss_n, dropout_key) = build_params_and_inputs()

    outs = hgd_classifier_forward(
        ep_text_rep, neigh_rep, batch_labels, loss_n, params,
        lamd=config["lamd"], dropout_p=config["dropout"],
        training=True, rng_key=dropout_key,
    )
    loss, loss_c, loss_n_o, _, logits, predicted_label = outs
    jax.block_until_ready((loss, loss_c, logits, predicted_label))

    B = ep_text_rep.shape[0]
    assert logits.shape == (B, 2)
    assert predicted_label.shape == (B,)
    assert loss.shape == () and loss_c.shape == ()

    # correctness check against the pure-JAX reference (same dropout mask)
    ref_loss, ref_loss_c, ref_logits, ref_pred = _reference_forward(
        ep_text_rep, neigh_rep, batch_labels, loss_n, params,
        lamd=config["lamd"], dropout_p=config["dropout"],
        training=True, rng_key=dropout_key,
    )
    assert bool(jnp.allclose(logits, ref_logits, rtol=1e-2, atol=1e-2))
    assert bool(jnp.allclose(loss_c, ref_loss_c, rtol=1e-2, atol=1e-2))
    assert bool(jnp.allclose(loss, ref_loss, rtol=1e-2, atol=1e-2))
    assert bool(jnp.all(predicted_label == ref_pred))

    print("KERNEL_OK")
</pallas_src>

<mosaic_0001>
module attributes {stable_mosaic.version = 11 : i64} {
  func.func @_hgd_head_kernel(%arg0: memref<1xf32, #tpu.memory_space<smem>>, %arg1: memref<8x128xf32, #tpu.memory_space<vmem>>, %arg2: memref<8x128xf32, #tpu.memory_space<vmem>>, %arg3: memref<8x256xf32, #tpu.memory_space<vmem>>, %arg4: memref<8x128xf32, #tpu.memory_space<vmem>>, %arg5: memref<128x128xf32, #tpu.memory_space<vmem>>, %arg6: memref<128x128xf32, #tpu.memory_space<vmem>>, %arg7: memref<1x128xf32, #tpu.memory_space<vmem>>, %arg8: memref<128x128xf32, #tpu.memory_space<vmem>>, %arg9: memref<1x128xf32, #tpu.memory_space<vmem>>, %arg10: memref<8x128xf32, #tpu.memory_space<vmem>>) attributes {dimension_semantics = [], scalar_prefetch = 0 : i64, scratch_operands = 0 : i64, tpu.core_type = #tpu.core_type<tc>} {
    %c0 = arith.constant 0 : index
    %c0_0 = arith.constant 0 : index
    %0 = vector.load %arg1[%c0, %c0_0] : memref<8x128xf32, #tpu.memory_space<vmem>>, vector<8x128xf32>
    %c0_1 = arith.constant 0 : index
    %c0_2 = arith.constant 0 : index
    %1 = vector.load %arg2[%c0_1, %c0_2] : memref<8x128xf32, #tpu.memory_space<vmem>>, vector<8x128xf32>
    %c0_3 = arith.constant 0 : index
    %c0_4 = arith.constant 0 : index
    %2 = vector.load %arg3[%c0_3, %c0_4] : memref<8x256xf32, #tpu.memory_space<vmem>>, vector<8x128xf32>
    %3 = arith.mulf %0, %2 : vector<8x128xf32>
    %c0_5 = arith.constant 0 : index
    %c128 = arith.constant 128 : index
    %4 = vector.load %arg3[%c0_5, %c128] : memref<8x256xf32, #tpu.memory_space<vmem>>, vector<8x128xf32>
    %5 = arith.mulf %1, %4 : vector<8x128xf32>
    %c0_6 = arith.constant 0 : index
    %c0_7 = arith.constant 0 : index
    %6 = vector.load %arg5[%c0_6, %c0_7] : memref<128x128xf32, #tpu.memory_space<vmem>>, vector<128x128xf32>
    %cst = arith.constant dense<0.000000e+00> : vector<8x128xf32>
    %7 = tpu.matmul %3, %6, %cst {dimension_numbers = #tpu.dot_dimension_numbers<[1], [0], [0], [1], [0, 0, 1, 1], [], []>} : vector<8x128xf32>, vector<128x128xf32>, vector<8x128xf32> -> vector<8x128xf32>
    %c0_8 = arith.constant 0 : index
    %c0_9 = arith.constant 0 : index
    %8 = vector.load %arg6[%c0_8, %c0_9] : memref<128x128xf32, #tpu.memory_space<vmem>>, vector<128x128xf32>
    %cst_10 = arith.constant dense<0.000000e+00> : vector<8x128xf32>
    %9 = tpu.matmul %5, %8, %cst_10 {dimension_numbers = #tpu.dot_dimension_numbers<[1], [0], [0], [1], [0, 0, 1, 1], [], []>} : vector<8x128xf32>, vector<128x128xf32>, vector<8x128xf32> -> vector<8x128xf32>
    %10 = arith.addf %7, %9 : vector<8x128xf32>
    %c0_11 = arith.constant 0 : index
    %c0_12 = arith.constant 0 : index
    %11 = vector.load %arg7[%c0_11, %c0_12] : memref<1x128xf32, #tpu.memory_space<vmem>>, vector<1x128xf32>
    %12 = vector.broadcast %11 : vector<1x128xf32> to vector<8x128xf32>
    %13 = arith.addf %10, %12 : vector<8x128xf32>
    %cst_13 = arith.constant 0.000000e+00 : f32
    %14 = vector.broadcast %cst_13 : f32 to vector<8x128xf32>
    %15 = arith.cmpf ogt, %13, %14 : vector<8x128xf32>
    %cst_14 = arith.constant 0.00999999977 : f32
    %16 = vector.broadcast %cst_14 : f32 to vector<8x128xf32>
    %17 = arith.mulf %16, %13 : vector<8x128xf32>
    %18 = arith.select %15, %13, %17 : vector<8x128xi1>, vector<8x128xf32>
    %c0_15 = arith.constant 0 : index
    %c0_16 = arith.constant 0 : index
    %19 = vector.load %arg8[%c0_15, %c0_16] : memref<128x128xf32, #tpu.memory_space<vmem>>, vector<128x128xf32>
    %cst_17 = arith.constant dense<0.000000e+00> : vector<8x128xf32>
    %20 = tpu.matmul %18, %19, %cst_17 {dimension_numbers = #tpu.dot_dimension_numbers<[1], [0], [0], [1], [0, 0, 1, 1], [], []>} : vector<8x128xf32>, vector<128x128xf32>, vector<8x128xf32> -> vector<8x128xf32>
    %c0_18 = arith.constant 0 : index
    %c0_19 = arith.constant 0 : index
    %21 = vector.load %arg9[%c0_18, %c0_19] : memref<1x128xf32, #tpu.memory_space<vmem>>, vector<1x128xf32>
    %22 = vector.broadcast %21 : vector<1x128xf32> to vector<8x128xf32>
    %23 = arith.addf %20, %22 : vector<8x128xf32>
    %24 = vector.extract_strided_slice %23 {offsets = [0, 0], sizes = [8, 1], strides = [1, 1]} : vector<8x128xf32> to vector<8x1xf32>
    %25 = vector.extract_strided_slice %23 {offsets = [0, 1], sizes = [8, 1], strides = [1, 1]} : vector<8x128xf32> to vector<8x1xf32>
    %26 = arith.cmpf ogt, %25, %24 : vector<8x1xf32>
    %27 = arith.extui %26 : vector<8x1xi1> to vector<8x1xi32>
    %28 = arith.sitofp %27 : vector<8x1xi32> to vector<8x1xf32>
    %29 = arith.maximumf %24, %25 : vector<8x1xf32>
    %30 = arith.subf %24, %29 : vector<8x1xf32>
    %31 = math.exp %30 : vector<8x1xf32>
    %32 = arith.subf %25, %29 : vector<8x1xf32>
    %33 = math.exp %32 : vector<8x1xf32>
    %34 = arith.addf %31, %33 : vector<8x1xf32>
    %35 = math.log %34 : vector<8x1xf32>
    %36 = arith.addf %29, %35 : vector<8x1xf32>
    %c0_20 = arith.constant 0 : index
    %c0_21 = arith.constant 0 : index
    %37 = vector.load %arg4[%c0_20, %c0_21] : memref<8x128xf32, #tpu.memory_space<vmem>>, vector<8x1xf32>
    %38 = arith.mulf %37, %25 : vector<8x1xf32>
    %cst_22 = arith.constant 1.000000e+00 : f32
    %39 = vector.broadcast %cst_22 : f32 to vector<8x1xf32>
    %40 = arith.subf %39, %37 : vector<8x1xf32>
    %41 = arith.mulf %40, %24 : vector<8x1xf32>
    %42 = arith.addf %38, %41 : vector<8x1xf32>
    %43 = arith.subf %36, %42 : vector<8x1xf32>
    %44 = vector.shape_cast %43 : vector<8x1xf32> to vector<1x8x1xf32>
    %cst_23 = arith.constant dense<0.000000e+00> : vector<1xf32>
    %45 = vector.multi_reduction <add>, %44, %cst_23 [1, 2] : vector<1x8x1xf32> to vector<1xf32>
    %46 = vector.shape_cast %45 : vector<1xf32> to vector<1x1x1xf32>
    %47 = vector.extract %46[0, 0, 0] : f32 from vector<1x1x1xf32>
    %cst_24 = arith.constant 1.250000e-01 : f32
    %48 = arith.mulf %47, %cst_24 : f32
    %c0_25 = arith.constant 0 : index
    %49 = memref.load %arg0[%c0_25] : memref<1xf32, #tpu.memory_space<smem>>
    %cst_26 = arith.constant 3.000000e-01 : f32
    %50 = arith.mulf %cst_26, %49 : f32
    %51 = arith.addf %48, %50 : f32
    %52 = tpu.iota {dimensions = array<i32: 1>} : vector<8x128xi32>
    %c2_i32 = arith.constant 2 : i32
    %53 = vector.broadcast %c2_i32 : i32 to vector<8x128xi32>
    %54 = arith.cmpi eq, %52, %53 : vector<8x128xi32>
    %55 = vector.shape_cast %28 : vector<8x1xf32> to vector<8x1xf32>
    %56 = vector.broadcast %55 : vector<8x1xf32> to vector<8x128xf32>
    %57 = arith.select %54, %56, %23 : vector<8x128xi1>, vector<8x128xf32>
    %c3_i32 = arith.constant 3 : i32
    %58 = vector.broadcast %c3_i32 : i32 to vector<8x128xi32>
    %59 = arith.cmpi eq, %52, %58 : vector<8x128xi32>
    %60 = vector.broadcast %48 : f32 to vector<8x128xf32>
    %61 = arith.select %59, %60, %57 : vector<8x128xi1>, vector<8x128xf32>
    %c4_i32 = arith.constant 4 : i32
    %62 = vector.broadcast %c4_i32 : i32 to vector<8x128xi32>
    %63 = arith.cmpi eq, %52, %62 : vector<8x128xi32>
    %64 = vector.broadcast %51 : f32 to vector<8x128xf32>
    %65 = arith.select %63, %64, %61 : vector<8x128xi1>, vector<8x128xf32>
    %c0_27 = arith.constant 0 : index
    %c0_28 = arith.constant 0 : index
    %66 = vector.load %arg10[%c0_27, %c0_28] : memref<8x128xf32, #tpu.memory_space<vmem>>, vector<8x128xf32>
    tpu.vector_store %arg10[%c0_27, %c0_28], %65 {strides = array<i32>} : memref<8x128xf32, #tpu.memory_space<vmem>>, vector<8x128xf32>,
    return
  }
}

</mosaic_0001>

<llo_original>
// kernel: tpu_custom_call.1
$region0: #{tpu_custom_call.1}
  #allocation0 [shape = 'u32[]', space=smem, size = 0x4, offset = 0x4, fixed_abs, tag = 'smem constant byte address 0x4 - core index']
  #allocation1 [shape = 'u32[144,128]{1,0:T(1,128)}', space=vmem, size = 0x12000, scoped, tag = 'internal scratch']
  #allocation2 [shape = 'f32[1]{0:T(128)S(6)}', space=smem, size = 0x200, scoped, tag = 'scoped memory for tpu_custom_call.1']
  %s0 = inlined_call_operand.<no memory space> [shape: f32[1], index: 0, kind: input, shape index: {}]
  %s1 = inlined_call_operand.hbm [shape: f32[8,128], index: 1, kind: input, shape index: {}]
  %s2 = inlined_call_operand.hbm [shape: f32[8,128], index: 2, kind: input, shape index: {}]
  %s3 = inlined_call_operand.hbm [shape: f32[8,256], index: 3, kind: input, shape index: {}]
  %s4 = inlined_call_operand.vmem [shape: f32[8,128], index: 4, kind: input, shape index: {}]
  %s5 = inlined_call_operand.hbm [shape: f32[128,128], index: 5, kind: input, shape index: {}]
  %s6 = inlined_call_operand.hbm [shape: f32[128,128], index: 6, kind: input, shape index: {}]
  %s7 = inlined_call_operand.vmem [shape: f32[1,128], index: 7, kind: input, shape index: {}]
  %s8 = inlined_call_operand.hbm [shape: f32[128,128], index: 8, kind: input, shape index: {}]
  %s9 = inlined_call_operand.vmem [shape: f32[1,128], index: 9, kind: input, shape index: {}]
  %s10 = inlined_call_operand.hbm [shape: f32[8,128], index: 10, kind: output, shape index: {}]
  %s11 = sld [smem:[#allocation0]]
  $region74: #{tpu_custom_call.1} parent=0
    _
  %s13 = ssub.s32 1, %s11
  %s14 = scalar_select 0, %s13, %s11
  %15 = sst [smem:[#allocation2]] %s0
  $region1: #{tpu_custom_call.1} parent=0
    #allocation3 [shape = 'u8[4096]{0}', space=vmem, size = 0x1000, scoped, tag = 'input window, operand 1, single buffered']
    #allocation4 [shape = 's32[1]{0}', space=sflag, size = 0x4, scoped, tag = 'scoped memory for tpu_custom_call.1']
    #allocation5 [shape = 's32[1]{0}', space=sflag, size = 0x4, scoped, tag = 'scoped memory for tpu_custom_call.1']
    #allocation6 [shape = 'u8[4096]{0}', space=vmem, size = 0x1000, scoped, tag = 'input window, operand 2, single buffered']
    #allocation7 [shape = 's32[1]{0}', space=sflag, size = 0x4, scoped, tag = 'scoped memory for tpu_custom_call.1']
    #allocation8 [shape = 'u8[8192]{0}', space=vmem, size = 0x2000, scoped, tag = 'input window, operand 3, single buffered']
    #allocation9 [shape = 'u8[65536]{0}', space=vmem, size = 0x10000, scoped, tag = 'input window, operand 5, single buffered']
    #allocation10 [shape = 's32[1]{0}', space=sflag, size = 0x4, scoped, tag = 'scoped memory for tpu_custom_call.1']
    #allocation11 [shape = 'u8[65536]{0}', space=vmem, size = 0x10000, scoped, tag = 'input window, operand 6, single buffered']
    #allocation12 [shape = 'u8[65536]{0}', space=vmem, size = 0x10000, scoped, tag = 'input window, operand 8, single buffered']
    #allocation13 [shape = 's32[1]{0}', space=sflag, size = 0x4, scoped, tag = 'scoped memory for tpu_custom_call.1']
    #allocation14 [shape = 'u8[4096]{0}', space=vmem, size = 0x1000, scoped, tag = 'output window, operand 0, single buffered']
    %16 = vsyncpa [#allocation4], 0
    %17 = vsyncpa [#allocation7], 0
    %18 = vsyncpa [#allocation10], 0
    %19 = vsyncpa [#allocation13], 0
    %20 = vsyncpa [#allocation5], 0
    // Predicated region
    $region2: #{tpu_custom_call.1} parent=1 // pred_check
      _
    $region3: #{tpu_custom_call.1} parent=1 // pred_check_branch
      %22 = sbr.rel (0) target = $region5
    $region4: #{tpu_custom_call.1} parent=1 // pred_region
      _
    $region5: #{tpu_custom_call.1} parent=1 // pred_fallthru
      _
    // Predicated region
    $region6: #{tpu_custom_call.1} parent=1 // pred_check
      _
    $region7: #{tpu_custom_call.1} parent=1 // pred_check_branch
      %24 = sbr.rel (0) target = $region9
    $region8: #{tpu_custom_call.1} parent=1 // pred_region
      %s26 = ssub.s32 128, 128
      %27 = vsyncadd [#allocation4], %s26
      %s29 = sshll.u32 [#allocation3], 4
      %s30 = int_to_ptr.vmem [resolvable:$true] %s29
      %32 = dma.hbm_to_vmem [thread:$0]  %s1, 128, %s30, [#allocation4]
    $region9: #{tpu_custom_call.1} parent=1 // pred_fallthru
      _
    // Predicated region
    $region10: #{tpu_custom_call.1} parent=1 // pred_check
      _
    $region11: #{tpu_custom_call.1} parent=1 // pred_check_branch
      %34 = sbr.rel (0) target = $region13
    $region12: #{tpu_custom_call.1} parent=1 // pred_region
      %s36 = ssub.s32 128, 128
      %37 = vsyncadd [#allocation7], %s36
      %s39 = sshll.u32 [#allocation6], 4
      %s40 = int_to_ptr.vmem [resolvable:$true] %s39
      %42 = dma.hbm_to_vmem [thread:$0]  %s2, 128, %s40, [#allocation7]
    $region13: #{tpu_custom_call.1} parent=1 // pred_fallthru
      _
    // Predicated region
    $region14: #{tpu_custom_call.1} parent=1 // pred_check
      _
    $region15: #{tpu_custom_call.1} parent=1 // pred_check_branch
      %44 = sbr.rel (0) target = $region17
    $region16: #{tpu_custom_call.1} parent=1 // pred_region
      %s46 = ssub.s32 256, 256
      %47 = vsyncadd [#allocation7], %s46
      %s49 = sshll.u32 [#allocation8], 4
      %s50 = int_to_ptr.vmem [resolvable:$true] %s49
      %52 = dma.hbm_to_vmem [thread:$0]  %s3, 256, %s50, [#allocation7]
    $region17: #{tpu_custom_call.1} parent=1 // pred_fallthru
      _
    // Predicated region
    $region18: #{tpu_custom_call.1} parent=1 // pred_check
      _
    $region19: #{tpu_custom_call.1} parent=1 // pred_check_branch
      %54 = sbr.rel (0) target = $region21
    $region20: #{tpu_custom_call.1} parent=1 // pred_region
      _
    $region21: #{tpu_custom_call.1} parent=1 // pred_fallthru
      _
    // Predicated region
    $region22: #{tpu_custom_call.1} parent=1 // pred_check
      _
    $region23: #{tpu_custom_call.1} parent=1 // pred_check_branch
      %56 = sbr.rel (0) target = $region25
    $region24: #{tpu_custom_call.1} parent=1 // pred_region
      %s58 = ssub.s32 2048, 2048
      %59 = vsyncadd [#allocation10], %s58
      %s60 = sshll.u32 [#allocation9], 4
      %s61 = int_to_ptr.vmem [resolvable:$true] %s60
      %66 = dma.hbm_to_vmem [thread:$0]  %s5, 2048, %s61, [#allocation10], 128, 128, 8
    $region25: #{tpu_custom_call.1} parent=1 // pred_fallthru
      _
    // Predicated region
    $region26: #{tpu_custom_call.1} parent=1 // pred_check
      _
    $region27: #{tpu_custom_call.1} parent=1 // pred_check_branch
      %68 = sbr.rel (0) target = $region29
    $region28: #{tpu_custom_call.1} parent=1 // pred_region
      %s70 = ssub.s32 2048, 2048
      %71 = vsyncadd [#allocation10], %s70
      %s72 = sshll.u32 [#allocation11], 4
      %s73 = int_to_ptr.vmem [resolvable:$true] %s72
      %78 = dma.hbm_to_vmem [thread:$0]  %s6, 2048, %s73, [#allocation10], 128, 128, 8
    $region29: #{tpu_custom_call.1} parent=1 // pred_fallthru
      _
    // Predicated region
    $region30: #{tpu_custom_call.1} parent=1 // pred_check
      _
    $region31: #{tpu_custom_call.1} parent=1 // pred_check_branch
      %80 = sbr.rel (0) target = $region33
    $region32: #{tpu_custom_call.1} parent=1 // pred_region
      _
    $region33: #{tpu_custom_call.1} parent=1 // pred_fallthru
      _
    // Predicated region
    $region34: #{tpu_custom_call.1} parent=1 // pred_check
      _
    $region35: #{tpu_custom_call.1} parent=1 // pred_check_branch
      %82 = sbr.rel (0) target = $region37
    $region36: #{tpu_custom_call.1} parent=1 // pred_region
      %s84 = ssub.s32 2048, 2048
      %85 = vsyncadd [#allocation13], %s84
      %s86 = sshll.u32 [#allocation12], 4
      %s87 = int_to_ptr.vmem [resolvable:$true] %s86
      %92 = dma.hbm_to_vmem [thread:$0]  %s8, 2048, %s87, [#allocation13], 128, 128, 8
    $region37: #{tpu_custom_call.1} parent=1 // pred_fallthru
      _
    // Predicated region
    $region38: #{tpu_custom_call.1} parent=1 // pred_check
      _
    $region39: #{tpu_custom_call.1} parent=1 // pred_check_branch
      %94 = sbr.rel (0) target = $region41
    $region40: #{tpu_custom_call.1} parent=1 // pred_region
      _
    $region41: #{tpu_custom_call.1} parent=1 // pred_fallthru
      _
    // Predicated region
    $region42: #{tpu_custom_call.1} parent=1 // pred_check
      _
    $region43: #{tpu_custom_call.1} parent=1 // pred_check_branch
      %96 = sbr.rel (0) target = $region45
    $region44: #{tpu_custom_call.1} parent=1 // pred_region
      %97 = dma.done [#allocation4], 128
    $region45: #{tpu_custom_call.1} parent=1 // pred_fallthru
      _
    // Predicated region
    $region46: #{tpu_custom_call.1} parent=1 // pred_check
      _
    $region47: #{tpu_custom_call.1} parent=1 // pred_check_branch
      %99 = sbr.rel (0) target = $region49
    $region48: #{tpu_custom_call.1} parent=1 // pred_region
      %100 = dma.done [#allocation7], 128
    $region49: #{tpu_custom_call.1} parent=1 // pred_fallthru
      _
    // Predicated region
    $region50: #{tpu_custom_call.1} parent=1 // pred_check
      _
    $region51: #{tpu_custom_call.1} parent=1 // pred_check_branch
      %102 = sbr.rel (0) target = $region53
    $region52: #{tpu_custom_call.1} parent=1 // pred_region
      %103 = dma.done [#allocation7], 256
    $region53: #{tpu_custom_call.1} parent=1 // pred_fallthru
      _
    // Predicated region
    $region54: #{tpu_custom_call.1} parent=1 // pred_check
      _
    $region55: #{tpu_custom_call.1} parent=1 // pred_check_branch
      %105 = sbr.rel (0) target = $region57
    $region56: #{tpu_custom_call.1} parent=1 // pred_region
      %106 = dma.done [#allocation10], 2048
    $region57: #{tpu_custom_call.1} parent=1 // pred_fallthru
      _
    // Predicated region
    $region58: #{tpu_custom_call.1} parent=1 // pred_check
      _
    $region59: #{tpu_custom_call.1} parent=1 // pred_check_branch
      %108 = sbr.rel (0) target = $region61
    $region60: #{tpu_custom_call.1} parent=1 // pred_region
      %109 = dma.done [#allocation10], 2048
    $region61: #{tpu_custom_call.1} parent=1 // pred_fallthru
      _
    // Predicated region
    $region62: #{tpu_custom_call.1} parent=1 // pred_check
      _
    $region63: #{tpu_custom_call.1} parent=1 // pred_check_branch
      %111 = sbr.rel (0) target = $region65
    $region64: #{tpu_custom_call.1} parent=1 // pred_region
      %112 = dma.done [#allocation13], 2048
    $region65: #{tpu_custom_call.1} parent=1 // pred_fallthru
      _
    %v113 = vld [vmem:[#allocation3] sm:$0xff]
    %v114 = vld [vmem:[#allocation6] sm:$0xff]
    %v115 = vld [vmem:[#allocation8] sm:$0xff]
    %v116 = vmul.f32 %v113, %v115
    %v117 = vld [vmem:[#allocation8 + $0x8] sm:$0xff]
    %v118 = vmul.f32 %v114, %v117
    %v119 = vld [vmem:[#allocation9] sm:$0xff]
    %v120 = vld [vmem:[#allocation9 + $0x8] sm:$0xff]
    %v121 = vld [vmem:[#allocation9 + $0x10] sm:$0xff]
    %v122 = vld [vmem:[#allocation9 + $0x18] sm:$0xff]
    %v123 = vld [vmem:[#allocation9 + $0x20] sm:$0xff]
    %v124 = vld [vmem:[#allocation9 + $0x28] sm:$0xff]
    %v125 = vld [vmem:[#allocation9 + $0x30] sm:$0xff]
    %v126 = vld [vmem:[#allocation9 + $0x38] sm:$0xff]
    %v127 = vld [vmem:[#allocation9 + $0x40] sm:$0xff]
    %v128 = vld [vmem:[#allocation9 + $0x48] sm:$0xff]
    %v129 = vld [vmem:[#allocation9 + $0x50] sm:$0xff]
    %v130 = vld [vmem:[#allocation9 + $0x58] sm:$0xff]
    %v131 = vld [vmem:[#allocation9 + $0x60] sm:$0xff]
    %v132 = vld [vmem:[#allocation9 + $0x68] sm:$0xff]
    %v133 = vld [vmem:[#allocation9 + $0x70] sm:$0xff]
    %v134 = vld [vmem:[#allocation9 + $0x78] sm:$0xff]
    %v135 = vld [vmem:[#allocation11] sm:$0xff]
    %v136 = vld [vmem:[#allocation11 + $0x8] sm:$0xff]
    %v137 = vld [vmem:[#allocation11 + $0x10] sm:$0xff]
    %v138 = vld [vmem:[#allocation11 + $0x18] sm:$0xff]
    %v139 = vld [vmem:[#allocation11 + $0x20] sm:$0xff]
    %v140 = vld [vmem:[#allocation11 + $0x28] sm:$0xff]
    %v141 = vld [vmem:[#allocation11 + $0x30] sm:$0xff]
    %v142 = vld [vmem:[#allocation11 + $0x38] sm:$0xff]
    %v143 = vld [vmem:[#allocation11 + $0x40] sm:$0xff]
    %v144 = vld [vmem:[#allocation11 + $0x48] sm:$0xff]
    %v145 = vld [vmem:[#allocation11 + $0x50] sm:$0xff]
    %v146 = vld [vmem:[#allocation11 + $0x58] sm:$0xff]
    %v147 = vld [vmem:[#allocation11 + $0x60] sm:$0xff]
    %v148 = vld [vmem:[#allocation11 + $0x68] sm:$0xff]
    %v149 = vld [vmem:[#allocation11 + $0x70] sm:$0xff]
    %v150 = vld [vmem:[#allocation11 + $0x78] sm:$0xff]
    %151 = vmatprep.subr.mxu0 0.0
    %152 = vmatpush1.msra.mxu0 %v135
    %153 = vmatprep.subr.mxu0 0.0
    %154 = vmatpush1.msra.mxu0 %v136
    %155 = vmatprep.subr.mxu0 0.0
    %156 = vmatpush1.msra.mxu0 %v137
    %157 = vmatprep.subr.mxu0 0.0
    %158 = vmatpush1.msra.mxu0 %v138
    %159 = vmatprep.subr.mxu0 0.0
    %160 = vmatpush1.msra.mxu0 %v139
    %161 = vmatprep.subr.mxu0 0.0
    %162 = vmatpush1.msra.mxu0 %v140
    %163 = vmatprep.subr.mxu0 0.0
    %164 = vmatpush1.msra.mxu0 %v141
    %165 = vmatprep.subr.mxu0 0.0
    %166 = vmatpush1.msra.mxu0 %v142
    %167 = vmatprep.subr.mxu0 0.0
    %168 = vmatpush1.msra.mxu0 %v143
    %169 = vmatprep.subr.mxu0 0.0
    %170 = vmatpush1.msra.mxu0 %v144
    %171 = vmatprep.subr.mxu0 0.0
    %172 = vmatpush1.msra.mxu0 %v145
    %173 = vmatprep.subr.mxu0 0.0
    %174 = vmatpush1.msra.mxu0 %v146
    %175 = vmatprep.subr.mxu0 0.0
    %176 = vmatpush1.msra.mxu0 %v147
    %177 = vmatprep.subr.mxu0 0.0
    %178 = vmatpush1.msra.mxu0 %v148
    %179 = vmatprep.subr.mxu0 0.0
    %180 = vmatpush1.msra.mxu0 %v149
    %181 = vmatprep.subr.mxu0 0.0
    %182 = vmatpush1.msra.mxu0 %v150
    %183 = vmatprep.subr.mxu0 0.0
    %184 = vmatpush1.msra.mxu0 0.0
    %185 = vmatprep.subr.mxu0 0.0
    %186 = vmatpush1.msra.mxu0 0.0
    %187 = vmatprep.subr.mxu0 0.0
    %188 = vmatpush1.msra.mxu0 0.0
    %189 = vmatprep.subr.mxu0 0.0
    %190 = vmatpush1.msra.mxu0 0.0
    %191 = vmatprep.subr.mxu0 0.0
    %192 = vmatpush1.msra.mxu0 0.0
    %193 = vmatprep.subr.mxu0 0.0
    %194 = vmatpush1.msra.mxu0 0.0
    %195 = vmatprep.subr.mxu0 0.0
    %196 = vmatpush1.msra.mxu0 0.0
    %197 = vmatprep.subr.mxu0 0.0
    %198 = vmatpush1.msra.mxu0 0.0
    %199 = vmatprep.subr.mxu0 0.0
    %200 = vmatpush1.msra.mxu0 0.0
    %201 = vmatprep.subr.mxu0 0.0
    %202 = vmatpush1.msra.mxu0 0.0
    %203 = vmatprep.subr.mxu0 0.0
    %204 = vmatpush1.msra.mxu0 0.0
    %205 = vmatprep.subr.mxu0 0.0
    %206 = vmatpush1.msra.mxu0 0.0
    %207 = vmatprep.subr.mxu0 0.0
    %208 = vmatpush1.msra.mxu0 0.0
    %209 = vmatprep.subr.mxu0 0.0
    %210 = vmatpush1.msra.mxu0 0.0
    %211 = vmatprep.subr.mxu0 0.0
    %212 = vmatpush1.msra.mxu0 0.0
    %213 = vmatprep.subr.mxu0 0.0
    %214 = vmatpush1.msra.mxu0 0.0
    %215 = vmatprep.mubr.f32.mxu0 0.0
    %216 = vmatmul.mubr.f32.gmra.mrb[0].mxu0 %v118
    %v217 = vpop.f32.mrb[0].mxu0
    %v218 = vadd.f32 0.0, %v217
    %v219 = vpop.f32.mrb[0].mxu0
    %220 = vdwg.mxu0
    %221 = vmatprep.subr.mxu0 0.0
    %222 = vmatpush1.msra.mxu0 %v119
    %223 = vmatprep.subr.mxu0 0.0
    %224 = vmatpush1.msra.mxu0 %v120
    %225 = vmatprep.subr.mxu0 0.0
    %226 = vmatpush1.msra.mxu0 %v121
    %227 = vmatprep.subr.mxu0 0.0
    %228 = vmatpush1.msra.mxu0 %v122
    %229 = vmatprep.subr.mxu0 0.0
    %230 = vmatpush1.msra.mxu0 %v123
    %231 = vmatprep.subr.mxu0 0.0
    %232 = vmatpush1.msra.mxu0 %v124
    %233 = vmatprep.subr.mxu0 0.0
    %234 = vmatpush1.msra.mxu0 %v125
    %235 = vmatprep.subr.mxu0 0.0
    %236 = vmatpush1.msra.mxu0 %v126
    %237 = vmatprep.subr.mxu0 0.0
    %238 = vmatpush1.msra.mxu0 %v127
    %239 = vmatprep.subr.mxu0 0.0
    %240 = vmatpush1.msra.mxu0 %v128
    %241 = vmatprep.subr.mxu0 0.0
    %242 = vmatpush1.msra.mxu0 %v129
    %243 = vmatprep.subr.mxu0 0.0
    %244 = vmatpush1.msra.mxu0 %v130
    %245 = vmatprep.subr.mxu0 0.0
    %246 = vmatpush1.msra.mxu0 %v131
    %247 = vmatprep.subr.mxu0 0.0
    %248 = vmatpush1.msra.mxu0 %v132
    %249 = vmatprep.subr.mxu0 0.0
    %250 = vmatpush1.msra.mxu0 %v133
    %251 = vmatprep.subr.mxu0 0.0
    %252 = vmatpush1.msra.mxu0 %v134
    %253 = vmatprep.subr.mxu0 0.0
    %254 = vmatpush1.msra.mxu0 0.0
    %255 = vmatprep.subr.mxu0 0.0
    %256 = vmatpush1.msra.mxu0 0.0
    %257 = vmatprep.subr.mxu0 0.0
    %258 = vmatpush1.msra.mxu0 0.0
    %259 = vmatprep.subr.mxu0 0.0
    %260 = vmatpush1.msra.mxu0 0.0
    %261 = vmatprep.subr.mxu0 0.0
    %262 = vmatpush1.msra.mxu0 0.0
    %263 = vmatprep.subr.mxu0 0.0
    %264 = vmatpush1.msra.mxu0 0.0
    %265 = vmatprep.subr.mxu0 0.0
    %266 = vmatpush1.msra.mxu0 0.0
    %267 = vmatprep.subr.mxu0 0.0
    %268 = vmatpush1.msra.mxu0 0.0
    %269 = vmatprep.subr.mxu0 0.0
    %270 = vmatpush1.msra.mxu0 0.0
    %271 = vmatprep.subr.mxu0 0.0
    %272 = vmatpush1.msra.mxu0 0.0
    %273 = vmatprep.subr.mxu0 0.0
    %274 = vmatpush1.msra.mxu0 0.0
    %275 = vmatprep.subr.mxu0 0.0
    %276 = vmatpush1.msra.mxu0 0.0
    %277 = vmatprep.subr.mxu0 0.0
    %278 = vmatpush1.msra.mxu0 0.0
    %279 = vmatprep.subr.mxu0 0.0
    %280 = vmatpush1.msra.mxu0 0.0
    %281 = vmatprep.subr.mxu0 0.0
    %282 = vmatpush1.msra.mxu0 0.0
    %283 = vmatprep.subr.mxu0 0.0
    %284 = vmatpush1.msra.mxu0 0.0
    %285 = vmatprep.mubr.f32.mxu0 0.0
    %286 = vmatmul.mubr.f32.gmra.mrb[0].mxu0 %v116
    %v287 = vpop.f32.mrb[0].mxu0
    %v288 = vadd.f32 %v218, %v287
    %v289 = vpop.f32.mrb[0].mxu0
    %290 = vdwg.mxu0
    %v291 = vld [vmem:[%s7] sm:$0x1]
    %v293 = vlaneseq
    %v294 = vshrl.u32 %v293, 7
    %v295 = vsub.s32 0, %v294
    %v296 = vrot.slane %v291, %v295
    %v298 = vadd.f32 %v288, %v296
    %vm299 = vcmp.gt.f32.partialorder %v298, 0.0
    %v300 = vmul.f32 %v298, 0.01
    %v301 = vsel %vm299, %v298, %v300
    %v302 = vld [vmem:[#allocation12] sm:$0xff]
    %v303 = vld [vmem:[#allocation12 + $0x8] sm:$0xff]
    %v304 = vld [vmem:[#allocation12 + $0x10] sm:$0xff]
    %v305 = vld [vmem:[#allocation12 + $0x18] sm:$0xff]
    %v306 = vld [vmem:[#allocation12 + $0x20] sm:$0xff]
    %v307 = vld [vmem:[#allocation12 + $0x28] sm:$0xff]
    %v308 = vld [vmem:[#allocation12 + $0x30] sm:$0xff]
    %v309 = vld [vmem:[#allocation12 + $0x38] sm:$0xff]
    %v310 = vld [vmem:[#allocation12 + $0x40] sm:$0xff]
    %v311 = vld [vmem:[#allocation12 + $0x48] sm:$0xff]
    %v312 = vld [vmem:[#allocation12 + $0x50] sm:$0xff]
    %v313 = vld [vmem:[#allocation12 + $0x58] sm:$0xff]
    %v314 = vld [vmem:[#allocation12 + $0x60] sm:$0xff]
    %v315 = vld [vmem:[#allocation12 + $0x68] sm:$0xff]
    %v316 = vld [vmem:[#allocation12 + $0x70] sm:$0xff]
    %v317 = vld [vmem:[#allocation12 + $0x78] sm:$0xff]
    %v318 = vld [vmem:[%s9] sm:$0x1]
    %v320 = vlaneseq
    %v321 = vshrl.u32 %v320, 7
    %v322 = vsub.s32 0, %v321
    %v323 = vrot.slane %v318, %v322
    %325 = vmatprep.subr.mxu0 0.0
    %326 = vmatpush1.msra.mxu0 %v302
    %327 = vmatprep.subr.mxu0 0.0
    %328 = vmatpush1.msra.mxu0 %v303
    %329 = vmatprep.subr.mxu0 0.0
    %330 = vmatpush1.msra.mxu0 %v304
    %331 = vmatprep.subr.mxu0 0.0
    %332 = vmatpush1.msra.mxu0 %v305
    %333 = vmatprep.subr.mxu0 0.0
    %334 = vmatpush1.msra.mxu0 %v306
    %335 = vmatprep.subr.mxu0 0.0
    %336 = vmatpush1.msra.mxu0 %v307
    %337 = vmatprep.subr.mxu0 0.0
    %338 = vmatpush1.msra.mxu0 %v308
    %339 = vmatprep.subr.mxu0 0.0
    %340 = vmatpush1.msra.mxu0 %v309
    %341 = vmatprep.subr.mxu0 0.0
    %342 = vmatpush1.msra.mxu0 %v310
    %343 = vmatprep.subr.mxu0 0.0
    %344 = vmatpush1.msra.mxu0 %v311
    %345 = vmatprep.subr.mxu0 0.0
    %346 = vmatpush1.msra.mxu0 %v312
    %347 = vmatprep.subr.mxu0 0.0
    %348 = vmatpush1.msra.mxu0 %v313
    %349 = vmatprep.subr.mxu0 0.0
    %350 = vmatpush1.msra.mxu0 %v314
    %351 = vmatprep.subr.mxu0 0.0
    %352 = vmatpush1.msra.mxu0 %v315
    %353 = vmatprep.subr.mxu0 0.0
    %354 = vmatpush1.msra.mxu0 %v316
    %355 = vmatprep.subr.mxu0 0.0
    %356 = vmatpush1.msra.mxu0 %v317
    %357 = vmatprep.subr.mxu0 0.0
    %358 = vmatpush1.msra.mxu0 0.0
    %359 = vmatprep.subr.mxu0 0.0
    %360 = vmatpush1.msra.mxu0 0.0
    %361 = vmatprep.subr.mxu0 0.0
    %362 = vmatpush1.msra.mxu0 0.0
    %363 = vmatprep.subr.mxu0 0.0
    %364 = vmatpush1.msra.mxu0 0.0
    %365 = vmatprep.subr.mxu0 0.0
    %366 = vmatpush1.msra.mxu0 0.0
    %367 = vmatprep.subr.mxu0 0.0
    %368 = vmatpush1.msra.mxu0 0.0
    %369 = vmatprep.subr.mxu0 0.0
    %370 = vmatpush1.msra.mxu0 0.0
    %371 = vmatprep.subr.mxu0 0.0
    %372 = vmatpush1.msra.mxu0 0.0
    %373 = vmatprep.subr.mxu0 0.0
    %374 = vmatpush1.msra.mxu0 0.0
    %375 = vmatprep.subr.mxu0 0.0
    %376 = vmatpush1.msra.mxu0 0.0
    %377 = vmatprep.subr.mxu0 0.0
    %378 = vmatpush1.msra.mxu0 0.0
    %379 = vmatprep.subr.mxu0 0.0
    %380 = vmatpush1.msra.mxu0 0.0
    %381 = vmatprep.subr.mxu0 0.0
    %382 = vmatpush1.msra.mxu0 0.0
    %383 = vmatprep.subr.mxu0 0.0
    %384 = vmatpush1.msra.mxu0 0.0
    %385 = vmatprep.subr.mxu0 0.0
    %386 = vmatpush1.msra.mxu0 0.0
    %387 = vmatprep.subr.mxu0 0.0
    %388 = vmatpush1.msra.mxu0 0.0
    %389 = vmatprep.mubr.f32.mxu0 0.0
    %390 = vmatmul.mubr.f32.gmra.mrb[0].mxu0 %v301
    %v391 = vpop.f32.mrb[0].mxu0
    %v392 = vadd.f32 %v323, %v391
    %v393 = vpop.f32.mrb[0].mxu0
    %394 = vdwg.mxu0
    %396 = vrot.lane.b32.xlu0 %v392, 1
    %v397 = vpop.permute.xlu0 %396
    %vm399 = vcmp.gt.f32.partialorder %v392, %v397
    %v400 = vsel %vm399, 1, 0
    %v401 = vcvt.s32.f32 %v400
    %402 = vrot.lane.b32.xlu0 %v392, 127
    %v403 = vpop.permute.xlu0 %402
    %v405 = vmax.f32 %v392, %v403
    %v406 = vsub.f32 %v392, %v405
    %v407 = vmul.f32 %v406, 1.442695
    %v408 = vpow.pop %v407
    %410 = vrot.lane.b32.xlu0 %v405, 1
    %v411 = vpop.permute.xlu0 %410
    %v413 = vsub.f32 %v392, %v411
    %v414 = vmul.f32 %v413, 1.442695
    %v415 = vpow.pop %v414
    %417 = vrot.lane.b32.xlu0 %v415, 127
    %v418 = vpop.permute.xlu0 %417
    %v420 = vadd.f32 %v408, %v418
    %v421 = vlog2.pop %v420
    %v422 = vmul.f32 %v421, 0.6931472
    %v423 = vadd.f32 %v405, %v422
    %v424 = vld [vmem:[%s4] sm:$0xff]
    %v425 = vmul.f32 %v424, %v403
    %v426 = vsub.f32 1.0, %v424
    %v427 = vmul.f32 %v426, %v392
    %v428 = vadd.f32 %v425, %v427
    %v429 = vsub.f32 %v423, %v428
    %vm430 = vcmask 7168
    %v431 = vsel %vm430, %v429, 0.0
    %432 = vadd.xlane.f32.xlu0 %v431
    %v433 = vpop.xlane.xlu0 %432
    %v434 = vrot.slane %v433, 4
    %v435 = vadd.f32 %v433, %v434
    %v436 = vrot.slane %v435, 2
    %v437 = vadd.f32 %v435, %v436
    %v438 = vrot.slane %v437, 1
    %v439 = vadd.f32 %v437, %v438
    %s440 = vtos %v439
    %s441 = smul.f32 %s440, 0.125
    %s442 = sld [smem:[#allocation2]]
    %s443 = smul.f32 %s442, 0.3
    %s444 = sadd.f32 %s441, %s443
    %v445 = vlaneseq
    %v446 = vand.u32 %v445, 127
    %vm447 = vcmp.eq.s32.totalorder %v446, 2
    %449 = vset.pattern.permute.xlu0 1
    %450 = vperm.xlu0 %449, %v401
    %v451 = vpop.permute.xlu0 %450
    %v453 = vsel %vm447, %v451, %v392
    %vm454 = vcmp.eq.s32.totalorder %v446, 3
    %v455 = vstv %s441
    %v456 = vsel %vm454, %v455, %v453
    %vm457 = vcmp.eq.s32.totalorder %v446, 4
    %v458 = vstv %s444
    %v459 = vsel %vm457, %v458, %v456
    %460 = vst [vmem:[#allocation14] sm:$0xff] %v459
    // Predicated region
    $region66: #{tpu_custom_call.1} parent=1 // pred_check
      _
    $region67: #{tpu_custom_call.1} parent=1 // pred_check_branch
      %462 = sbr.rel (0) target = $region69
    $region68: #{tpu_custom_call.1} parent=1 // pred_region
      %s464 = ssub.s32 128, 128
      %465 = vsyncadd [#allocation5], %s464
      %s467 = sshll.u32 [#allocation14], 4
      %s468 = int_to_ptr.vmem [resolvable:$true] %s467
      %470 = dma.vmem_to_hbm [thread:$0]  %s468, 128, %s10, [#allocation5]
    $region69: #{tpu_custom_call.1} parent=1 // pred_fallthru
      _
    // Predicated region
    $region70: #{tpu_custom_call.1} parent=1 // pred_check
      _
    $region71: #{tpu_custom_call.1} parent=1 // pred_check_branch
      %472 = sbr.rel (0) target = $region73
    $region72: #{tpu_custom_call.1} parent=1 // pred_region
      %473 = dma.done [#allocation5], 128
    $region73: #{tpu_custom_call.1} parent=1 // pred_fallthru
      _
    %474 = vsyncpa [#allocation4], 1
    %475 = vsyncpa [#allocation7], 1
    %476 = vsyncpa [#allocation10], 1
    %477 = vsyncpa [#allocation13], 1
    %478 = vsyncpa [#allocation5], 1

</llo_original>
